<compile_context>
chip_gen: v7x
topology: tpu7x:2x2x1
jax: 0.10.0
libtpu: 0.0.40
codegen_flags: <defaults>
</compile_context>

<pallas_src>
import functools

import jax
import jax.numpy as jnp
from jax import lax
from jax.experimental import pallas as pl
from jax.experimental.pallas import tpu as pltpu

# loss weights (would come from the config in the real module)
TCL_W = 0.1
AREA_W = 0.4
TV_W = 1.0
EPS = 1e-6


def _cdiv(a, b):
    return -(-a // b)


def _round_up(a, b):
    return _cdiv(a, b) * b


def _vmem_capacity_bytes():
    try:
        return int(pltpu.get_tpu_info().vmem_capacity_bytes)
    except Exception:  # pragma: no cover - be v7x-safe if the query is unavailable
        return 64 << 20


# ---------------------------------------------------------------------------
# in-kernel helpers
# ---------------------------------------------------------------------------
def _boundary_multipliers(L_true, Lp, W):
    """{0,1} f32 lane multipliers selecting valid TV neighbour pairs.

    Built from a lane-index iota rolled *together with* the data, so the result is
    independent of the hardware roll direction (two single-sublane XLU rolls +
    compares per grid step, shared by the emb and mask TV passes).  Padded lanes
    (l >= L_true) are excluded explicitly.
    """
    lane = lax.broadcasted_iota(jnp.int32, (1, 1, Lp), 2)
    lw = pltpu.roll(lane, shift=Lp - 1, axis=2)     # index of the |delta| = 1 neighbour
    lh = pltpu.roll(lane, shift=Lp - W, axis=2)     # index of the |delta| = W neighbour

    pair_w = ((jnp.abs(lw - lane) == 1)
              & (jnp.minimum(lane, lw) % W != W - 1)
              & (jnp.maximum(lane, lw) < L_true))
    pair_h = ((jnp.abs(lh - lane) == W)
              & (jnp.maximum(lane, lh) < L_true))
    if Lp == 2 * W:  # wrap-around pairs alias valid pairs; keep each pair exactly once
        pair_h = pair_h & (lane < lh)
    return pair_w.astype(jnp.float32), pair_h.astype(jnp.float32)


def _tv_lane_partial(x, shift, mul):
    """Sum over (batch, channel) of |x - roll(x)| * mul, keeping the lane axis.

    x: (bt, S, Lp) in its *native* dtype (bf16 stays bf16 on the VPU); the masked
    product / accumulation is f32.  Result: (1, 1, Lp) f32 lane partials — the final
    cross-lane reduce happens in plain JAX on a tiny array, keeping the XLU free for
    the data rolls.
    """
    d = jnp.abs(x - pltpu.roll(x, shift=shift, axis=2))
    return jnp.sum(d * mul, axis=(0, 1), keepdims=True)


# ---------------------------------------------------------------------------
# fused kernel: masked pool + per-slot mask lane partials + TV lane partials
# ---------------------------------------------------------------------------
def _tcl_fused_kernel(emb_ref, mask_ref, pooled_ref, stats_ref, *, W, L_true, eps):
    emb = emb_ref[...]                      # (bt, C, Lp)  native dtype (bf16 ok)
    mask = mask_ref[...]                    # (bt, N, Lp)  native dtype
    Lp = emb.shape[-1]
    N = mask.shape[1]

    # ---- masked pool (MXU) -------------------------------------------------
    # Both operands in one (native) dtype -> no implicit f32 promotion; f32
    # accumulation via preferred_element_type.  Normalize AFTER the matmul
    # (N*C scaling + a tiny reciprocal instead of N*L divides).
    raw = jnp.einsum("bnl,bcl->bnc", mask.astype(emb.dtype), emb,
                     preferred_element_type=jnp.float32)        # (bt, N, C)
    mask_f = mask.astype(jnp.float32)
    msum = jnp.sum(mask_f, axis=-1)                             # (bt, N) f32
    inv = pl.reciprocal(msum + eps, approx=False)
    pooled_ref[...] = (raw * inv[:, :, None]).astype(pooled_ref.dtype)

    # ---- TV lane partials + per-slot mask lane partials ---------------------
    w_mul, h_mul = _boundary_multipliers(L_true, Lp, W)
    stats_ref[:, 0:1, :] = _tv_lane_partial(emb, Lp - 1, w_mul)     # emb  dW
    stats_ref[:, 1:2, :] = _tv_lane_partial(emb, Lp - W, h_mul)     # emb  dH
    stats_ref[:, 2:3, :] = _tv_lane_partial(mask, Lp - 1, w_mul)    # mask dW
    stats_ref[:, 3:4, :] = _tv_lane_partial(mask, Lp - W, h_mul)    # mask dH
    # per-slot mask sums as lane partials (area losses) — no narrow extra output.
    stats_ref[:, 4:4 + N, :] = jnp.sum(mask_f, axis=0, keepdims=True)


def tcl_fused(spatial_image_emb, mask, *, eps=EPS):
    """One fused pass over emb [B,C,H,W] and mask [B,N,H,W].

    Pass `spatial_image_emb` as bf16 to halve the dominant HBM read on v5e/v6e; the
    kernel computes in the native dtype and accumulates in f32.

    Returns:
      image_emb [B, N, C] : mask-pooled embedding (the torch.einsum path)
      slot_sums [N]       : sum over (batch, H, W) of each mask slot  (-> area losses)
      tv_sums   [4]       : TV |diff| sums: emb-dW, emb-dH, mask-dW, mask-dH
    """
    B, C, H, W = spatial_image_emb.shape
    _, N, _, _ = mask.shape
    L = H * W
    Lp = _round_up(L, 128)                       # lane-dense flattened spatial axis

    emb = spatial_image_emb.reshape(B, C, L)
    m = mask.reshape(B, N, L)
    if Lp != L:                                  # zero pad: excluded by the pair masks
        pad = ((0, 0), (0, 0), (0, Lp - L))      # and contributes 0 to pool / msum
        emb = jnp.pad(emb, pad)
        m = jnp.pad(m, pad)

    # ---- per-generation block sizing (counts the in-kernel temporaries) -----
    cap = _vmem_capacity_bytes()
    if cap >= (96 << 20):                 # v5e / v6e class: 128 MiB physical VMEM
        resident_budget = 48 << 20
        vmem_cap = 96 << 20
        want_even_grid = False            # single TensorCore per chip
    else:                                 # v7x class: 64 MiB per TensorCore
        resident_budget = 22 << 20
        vmem_cap = 40 << 20
        want_even_grid = True             # keep both TensorCores fed

    esz = emb.dtype.itemsize
    msz = m.dtype.itemsize
    io_per_batch = C * Lp * esz + N * Lp * msz + N * C * esz
    # in-kernel temporaries (NOT double buffered): rolled copy + |diff| in the native
    # dtype and one f32 masked product on the emb TV path, f32 copies on the tiny mask
    # path, and the f32 pool accumulator.
    tmp_per_batch = 3 * C * Lp * max(esz, 4) + N * Lp * 12 + N * C * 4
    resident_per_batch = 2 * io_per_batch + tmp_per_batch
    stats_bytes = (4 + N) * Lp * 4

    bt = max(1, min(B, (resident_budget - 2 * stats_bytes) // resident_per_batch))
    if B >= 2:
        bt = min(bt, _cdiv(B, 2))         # >= 2 grid steps so a 2-TC chip has work
    G = _cdiv(B, bt)
    if want_even_grid and G % 2:
        G += 1                            # even grid: both v7x TensorCores stay busy
    Bp = G * bt
    if Bp != B:                           # pad batch instead of shrinking bt; padded
        pad = ((0, Bp - B), (0, 0), (0, 0))   # rows are all-zero -> 0 contribution
        emb = jnp.pad(emb, pad)
        m = jnp.pad(m, pad)
    # TODO(synk): if one batch element alone exceeds the budget (huge C*H*W), also
    # tile the TV pass over C; not needed for TCL-sized CLIP feature maps.

    vmem_limit = 2 * (bt * io_per_batch + stats_bytes) + bt * tmp_per_batch + (4 << 20)
    vmem_limit = int(min(max(vmem_limit, 16 << 20), vmem_cap))

    kern = functools.partial(_tcl_fused_kernel, W=W, L_true=L, eps=eps)
    pooled, stats = pl.pallas_call(
        kern,
        out_shape=(
            jax.ShapeDtypeStruct((Bp, N, C), spatial_image_emb.dtype),
            jax.ShapeDtypeStruct((G, 4 + N, Lp), jnp.float32),
        ),
        grid=(G,),
        in_specs=[
            pl.BlockSpec((bt, C, Lp), lambda g: (g, 0, 0)),
            pl.BlockSpec((bt, N, Lp), lambda g: (g, 0, 0)),
        ],
        out_specs=(
            pl.BlockSpec((bt, N, C), lambda g: (g, 0, 0)),    # lane-dense when C % 128 == 0
            pl.BlockSpec((1, 4 + N, Lp), lambda g: (g, 0, 0)),
        ),
        compiler_params=pltpu.CompilerParams(
            dimension_semantics=("parallel",),   # shards batch blocks across TCs (v7x)
            vmem_limit_bytes=vmem_limit,
        ),
    )(emb, m)

    image_emb = pooled[:B]
    tv_sums = jnp.sum(stats[:, 0:4, :], axis=(0, 2))          # (4,)
    slot_sums = jnp.sum(stats[:, 4:4 + N, :], axis=(0, 2))    # (N,)
    return image_emb, slot_sums, tv_sums


# ---------------------------------------------------------------------------
# TCL.forward() loss core (CLIP encoders / Masker replaced by synthetic features).
# ---------------------------------------------------------------------------
def tcl_forward_core(masks, s1_image_emb, s1_text_emb):
    ret = {}
    ret["mask"] = lax.stop_gradient(masks["soft_pos"])
    ret["neg_mask"] = lax.stop_gradient(masks["soft_neg"])

    B, C, H, W = s1_image_emb.shape
    n_pos = masks["soft_pos"].shape[1]
    n_all = masks["soft_all"].shape[1]
    n_neg = n_all - n_pos

    # one fused pass: masked pool + per-slot mask sums + TV partial sums (emb & mask)
    image_emb, slot_sums, tv_sums = tcl_fused(s1_image_emb, masks["soft_all"])
    ret["image_emb"] = image_emb
    # TODO(synk): ExtendedInfoNCE / InfoNCE losses and the CLIP image/text encoders
    # are external modules (not defined in this file) — not implemented here.

    if AREA_W:
        pos_mean = jnp.sum(slot_sums[:n_pos]) / (B * n_pos * H * W)
        ret["area_loss"] = jnp.abs(pos_mean - 0.4) * AREA_W
        if n_neg > 0:
            neg_mean = jnp.sum(slot_sums[n_pos:]) / (B * n_neg * H * W)
            ret["neg_area_loss"] = jnp.abs(neg_mean - 0.0) * AREA_W

    if TV_W:
        tv_img = 0.0
        tv_msk = 0.0
        if W > 1:
            tv_img = tv_img + tv_sums[0] / (B * C * H * (W - 1))
            tv_msk = tv_msk + tv_sums[2] / (B * n_all * H * (W - 1))
        if H > 1:
            tv_img = tv_img + tv_sums[1] / (B * C * (H - 1) * W)
            tv_msk = tv_msk + tv_sums[3] / (B * n_all * (H - 1) * W)
        ret["tv_img_loss"] = tv_img * TV_W
        ret["tv_mask_loss"] = tv_msk * TV_W
    return ret


# ---------------------------------------------------------------------------
# pure-JAX references for verification
# ---------------------------------------------------------------------------
def _ref_masked_pool(emb, mask):
    msum = mask.sum((2, 3), keepdims=True)
    w = mask / (msum + EPS)
    return jnp.einsum("bchw,bnhw->bnc", emb, w)


def _ref_tv(x):
    return (jnp.abs(x[:, :, :, :-1] - x[:, :, :, 1:]).mean()
            + jnp.abs(x[:, :, :-1, :] - x[:, :, 1:, :]).mean())


def _ref_area(mask, prior):
    return jnp.abs(mask.mean() - prior)


if __name__ == "__main__":
    key = jax.random.PRNGKey(0)

    def run_case(case_key, B, C, H, W, n_pos, n_neg):
        k1, k2, k3, k4 = jax.random.split(case_key, 4)
        soft_pos = jax.nn.sigmoid(jax.random.normal(k1, (B, n_pos, H, W), jnp.float32))
        soft_neg = jax.nn.sigmoid(jax.random.normal(k2, (B, n_neg, H, W), jnp.float32))
        soft_all = jnp.concatenate([soft_pos, soft_neg], axis=1)     # [B, n_all, H, W]
        masks = {"soft_pos": soft_pos, "soft_neg": soft_neg, "soft_all": soft_all}

        s1_image_emb = jax.random.normal(k3, (B, C, H, W), jnp.float32)
        s1_text_emb = jax.random.normal(k4, (B, C), jnp.float32)

        ret = tcl_forward_core(masks, s1_image_emb, s1_text_emb)
        jax.block_until_ready(ret)

        ref_pool = _ref_masked_pool(s1_image_emb, soft_all)
        assert jnp.allclose(ret["image_emb"], ref_pool, atol=5e-4, rtol=5e-4)
        assert jnp.allclose(ret["area_loss"], _ref_area(soft_pos, 0.4) * AREA_W, atol=1e-5)
        assert jnp.allclose(ret["neg_area_loss"], _ref_area(soft_neg, 0.0) * AREA_W, atol=1e-5)
        assert jnp.allclose(ret["tv_img_loss"], _ref_tv(s1_image_emb) * TV_W,
                            atol=1e-4, rtol=1e-4)
        assert jnp.allclose(ret["tv_mask_loss"], _ref_tv(soft_all) * TV_W,
                            atol=1e-4, rtol=1e-4)

    k_a, k_b = jax.random.split(key)
    # primary: 16x16 feature map (flattened spatial axis already a multiple of 128)
    run_case(k_a, B=2, C=128, H=16, W=16, n_pos=1, n_neg=1)
    # exercises lane padding (14*14 = 196 -> 256) and batch padding (B=3 -> 4)
    run_case(k_b, B=3, C=128, H=14, W=14, n_pos=2, n_neg=1)

    print("KERNEL_OK")
</pallas_src>

<mosaic_0001>
module attributes {stable_mosaic.version = 11 : i64} {
  func.func @_tcl_fused_kernel(%arg0: i32, %arg1: memref<1x128x256xf32, #tpu.memory_space<vmem>>, %arg2: memref<1x2x256xf32, #tpu.memory_space<vmem>>, %arg3: memref<1x2x128xf32, #tpu.memory_space<vmem>>, %arg4: memref<1x6x256xf32, #tpu.memory_space<vmem>>) attributes {dimension_semantics = [#tpu.dimension_semantics<parallel>], iteration_bounds = array<i64: 2>, scalar_prefetch = 0 : i64, scratch_operands = 0 : i64, tpu.core_type = #tpu.core_type<tc>, window_params = [{transform_indices = @transform_0, window_bounds = array<i64: 1, 128, 256>}, {transform_indices = @transform_1, window_bounds = array<i64: 1, 2, 256>}, {transform_indices = @transform_2, window_bounds = array<i64: 1, 2, 128>}, {transform_indices = @transform_3, window_bounds = array<i64: 1, 6, 256>}]} {
    %c0 = arith.constant 0 : index
    %c0_0 = arith.constant 0 : index
    %c0_1 = arith.constant 0 : index
    %0 = vector.load %arg1[%c0, %c0_0, %c0_1] : memref<1x128x256xf32, #tpu.memory_space<vmem>>, vector<1x128x256xf32>
    %c0_2 = arith.constant 0 : index
    %c0_3 = arith.constant 0 : index
    %c0_4 = arith.constant 0 : index
    %1 = vector.load %arg2[%c0_2, %c0_3, %c0_4] : memref<1x2x256xf32, #tpu.memory_space<vmem>>, vector<1x2x256xf32>
    "tpu.trace_start"() <{level = 10 : i32, message = "bnl,bcl->bnc"}> : () -> ()
    %cst = arith.constant dense<0.000000e+00> : vector<1x2x128xf32>
    %2 = tpu.matmul %1, %0, %cst {dimension_numbers = #tpu.dot_dimension_numbers<[2], [2], [1], [1], [0, 0, 0, 1, 1, 1], [0], [0]>} : vector<1x2x256xf32>, vector<1x128x256xf32>, vector<1x2x128xf32> -> vector<1x2x128xf32>
    "tpu.trace_stop"() : () -> ()
    %cst_5 = arith.constant dense<0.000000e+00> : vector<1x2xf32>
    %3 = vector.multi_reduction <add>, %1, %cst_5 [2] : vector<1x2x256xf32> to vector<1x2xf32>
    %cst_6 = arith.constant 9.99999997E-7 : f32
    %4 = vector.broadcast %cst_6 : f32 to vector<1x2xf32>
    %5 = arith.addf %3, %4 : vector<1x2xf32>
    %6 = tpu.reciprocal %5 : vector<1x2xf32> -> vector<1x2xf32>
    %7 = vector.shape_cast %6 : vector<1x2xf32> to vector<1x2x1xf32>
    %8 = vector.broadcast %7 : vector<1x2x1xf32> to vector<1x2x128xf32>
    %9 = arith.mulf %2, %8 : vector<1x2x128xf32>
    %c0_7 = arith.constant 0 : index
    %c0_8 = arith.constant 0 : index
    %c0_9 = arith.constant 0 : index
    %10 = vector.load %arg3[%c0_7, %c0_8, %c0_9] : memref<1x2x128xf32, #tpu.memory_space<vmem>>, vector<1x2x128xf32>
    tpu.vector_store %arg3[%c0_7, %c0_8, %c0_9], %9 {strides = array<i32>} : memref<1x2x128xf32, #tpu.memory_space<vmem>>, vector<1x2x128xf32>,
    %11 = tpu.iota {dimensions = array<i32: 2>} : vector<1x1x256xi32>
    %c255_i32 = arith.constant 255 : i32
    %12 = tpu.dynamic_rotate %11 by %c255_i32 dim 2 : vector<1x1x256xi32>, i32 -> vector<1x1x256xi32>
    %c240_i32 = arith.constant 240 : i32
    %13 = tpu.dynamic_rotate %11 by %c240_i32 dim 2 : vector<1x1x256xi32>, i32 -> vector<1x1x256xi32>
    %14 = arith.subi %12, %11 : vector<1x1x256xi32>
    %15 = math.absi %14 : vector<1x1x256xi32>
    %c1_i32 = arith.constant 1 : i32
    %16 = vector.broadcast %c1_i32 : i32 to vector<1x1x256xi32>
    %17 = arith.cmpi eq, %15, %16 : vector<1x1x256xi32>
    %18 = arith.minsi %11, %12 : vector<1x1x256xi32>
    %c16_i32 = arith.constant 16 : i32
    %c0_i32 = arith.constant 0 : i32
    %19 = arith.cmpi eq, %c16_i32, %c0_i32 : i32
    %c1_i32_10 = arith.constant 1 : i32
    %20 = arith.select %19, %c1_i32_10, %c16_i32 : i32
    %21 = vector.broadcast %20 : i32 to vector<1x1x256xi32>
    %22 = arith.remsi %18, %21 : vector<1x1x256xi32>
    %c0_i32_11 = arith.constant 0 : i32
    %23 = vector.broadcast %c0_i32_11 : i32 to vector<1x1x256xi32>
    %24 = arith.cmpi ne, %22, %23 : vector<1x1x256xi32>
    %c0_i32_12 = arith.constant 0 : i32
    %25 = vector.broadcast %c0_i32_12 : i32 to vector<1x1x256xi32>
    %26 = arith.cmpi slt, %22, %25 : vector<1x1x256xi32>
    %c0_i32_13 = arith.constant 0 : i32
    %27 = arith.cmpi slt, %20, %c0_i32_13 : i32
    %28 = vector.broadcast %27 : i1 to vector<1x1x256xi1>
    %29 = vector.broadcast %28 : vector<1x1x256xi1> to vector<1x1x256xi1>
    %30 = arith.xori %26, %29 : vector<1x1x256xi1>
    %31 = arith.andi %30, %24 : vector<1x1x256xi1>
    %32 = vector.broadcast %20 : i32 to vector<1x1x256xi32>
    %33 = arith.addi %22, %32 : vector<1x1x256xi32>
    %34 = arith.select %31, %33, %22 : vector<1x1x256xi1>, vector<1x1x256xi32>
    %c15_i32 = arith.constant 15 : i32
    %35 = vector.broadcast %c15_i32 : i32 to vector<1x1x256xi32>
    %36 = arith.cmpi ne, %34, %35 : vector<1x1x256xi32>
    %37 = arith.andi %17, %36 : vector<1x1x256xi1>
    %38 = arith.maxsi %11, %12 : vector<1x1x256xi32>
    %c256_i32 = arith.constant 256 : i32
    %39 = vector.broadcast %c256_i32 : i32 to vector<1x1x256xi32>
    %40 = arith.cmpi slt, %38, %39 : vector<1x1x256xi32>
    %41 = arith.andi %37, %40 : vector<1x1x256xi1>
    %42 = arith.subi %13, %11 : vector<1x1x256xi32>
    %43 = math.absi %42 : vector<1x1x256xi32>
    %c16_i32_14 = arith.constant 16 : i32
    %44 = vector.broadcast %c16_i32_14 : i32 to vector<1x1x256xi32>
    %45 = arith.cmpi eq, %43, %44 : vector<1x1x256xi32>
    %46 = arith.maxsi %11, %13 : vector<1x1x256xi32>
    %c256_i32_15 = arith.constant 256 : i32
    %47 = vector.broadcast %c256_i32_15 : i32 to vector<1x1x256xi32>
    %48 = arith.cmpi slt, %46, %47 : vector<1x1x256xi32>
    %49 = arith.andi %45, %48 : vector<1x1x256xi1>
    %50 = arith.extui %41 : vector<1x1x256xi1> to vector<1x1x256xi32>
    %51 = arith.sitofp %50 : vector<1x1x256xi32> to vector<1x1x256xf32>
    %52 = arith.extui %49 : vector<1x1x256xi1> to vector<1x1x256xi32>
    %53 = arith.sitofp %52 : vector<1x1x256xi32> to vector<1x1x256xf32>
    %c255_i32_16 = arith.constant 255 : i32
    %54 = tpu.dynamic_rotate %0 by %c255_i32_16 dim 2 : vector<1x128x256xf32>, i32 -> vector<1x128x256xf32>
    %55 = arith.subf %0, %54 : vector<1x128x256xf32>
    %56 = math.absf %55 : vector<1x128x256xf32>
    %57 = vector.broadcast %51 : vector<1x1x256xf32> to vector<1x128x256xf32>
    %58 = arith.mulf %56, %57 : vector<1x128x256xf32>
    %cst_17 = arith.constant dense<0.000000e+00> : vector<256xf32>
    %59 = vector.multi_reduction <add>, %58, %cst_17 [0, 1] : vector<1x128x256xf32> to vector<256xf32>
    %60 = vector.shape_cast %59 : vector<256xf32> to vector<1x1x256xf32>
    %c0_18 = arith.constant 0 : index
    %c0_19 = arith.constant 0 : index
    %c0_20 = arith.constant 0 : index
    %61 = vector.load %arg4[%c0_18, %c0_19, %c0_20] : memref<1x6x256xf32, #tpu.memory_space<vmem>>, vector<1x1x256xf32>
    tpu.vector_store %arg4[%c0_18, %c0_19, %c0_20], %60 {strides = array<i32>} : memref<1x6x256xf32, #tpu.memory_space<vmem>>, vector<1x1x256xf32>,
    %c240_i32_21 = arith.constant 240 : i32
    %62 = tpu.dynamic_rotate %0 by %c240_i32_21 dim 2 : vector<1x128x256xf32>, i32 -> vector<1x128x256xf32>
    %63 = arith.subf %0, %62 : vector<1x128x256xf32>
    %64 = math.absf %63 : vector<1x128x256xf32>
    %65 = vector.broadcast %53 : vector<1x1x256xf32> to vector<1x128x256xf32>
    %66 = arith.mulf %64, %65 : vector<1x128x256xf32>
    %cst_22 = arith.constant dense<0.000000e+00> : vector<256xf32>
    %67 = vector.multi_reduction <add>, %66, %cst_22 [0, 1] : vector<1x128x256xf32> to vector<256xf32>
    %68 = vector.shape_cast %67 : vector<256xf32> to vector<1x1x256xf32>
    %c0_23 = arith.constant 0 : index
    %c1 = arith.constant 1 : index
    %c0_24 = arith.constant 0 : index
    %69 = vector.load %arg4[%c0_23, %c1, %c0_24] : memref<1x6x256xf32, #tpu.memory_space<vmem>>, vector<1x1x256xf32>
    tpu.vector_store %arg4[%c0_23, %c1, %c0_24], %68 {strides = array<i32>} : memref<1x6x256xf32, #tpu.memory_space<vmem>>, vector<1x1x256xf32>,
    %c255_i32_25 = arith.constant 255 : i32
    %70 = tpu.dynamic_rotate %1 by %c255_i32_25 dim 2 : vector<1x2x256xf32>, i32 -> vector<1x2x256xf32>
    %71 = arith.subf %1, %70 : vector<1x2x256xf32>
    %72 = math.absf %71 : vector<1x2x256xf32>
    %73 = vector.broadcast %51 : vector<1x1x256xf32> to vector<1x2x256xf32>
    %74 = arith.mulf %72, %73 : vector<1x2x256xf32>
    %cst_26 = arith.constant dense<0.000000e+00> : vector<256xf32>
    %75 = vector.multi_reduction <add>, %74, %cst_26 [0, 1] : vector<1x2x256xf32> to vector<256xf32>
    %76 = vector.shape_cast %75 : vector<256xf32> to vector<1x1x256xf32>
    %c0_27 = arith.constant 0 : index
    %c2 = arith.constant 2 : index
    %c0_28 = arith.constant 0 : index
    %77 = vector.load %arg4[%c0_27, %c2, %c0_28] : memref<1x6x256xf32, #tpu.memory_space<vmem>>, vector<1x1x256xf32>
    tpu.vector_store %arg4[%c0_27, %c2, %c0_28], %76 {strides = array<i32>} : memref<1x6x256xf32, #tpu.memory_space<vmem>>, vector<1x1x256xf32>,
    %c240_i32_29 = arith.constant 240 : i32
    %78 = tpu.dynamic_rotate %1 by %c240_i32_29 dim 2 : vector<1x2x256xf32>, i32 -> vector<1x2x256xf32>
    %79 = arith.subf %1, %78 : vector<1x2x256xf32>
    %80 = math.absf %79 : vector<1x2x256xf32>
    %81 = vector.broadcast %53 : vector<1x1x256xf32> to vector<1x2x256xf32>
    %82 = arith.mulf %80, %81 : vector<1x2x256xf32>
    %cst_30 = arith.constant dense<0.000000e+00> : vector<256xf32>
    %83 = vector.multi_reduction <add>, %82, %cst_30 [0, 1] : vector<1x2x256xf32> to vector<256xf32>
    %84 = vector.shape_cast %83 : vector<256xf32> to vector<1x1x256xf32>
    %c0_31 = arith.constant 0 : index
    %c3 = arith.constant 3 : index
    %c0_32 = arith.constant 0 : index
    %85 = vector.load %arg4[%c0_31, %c3, %c0_32] : memref<1x6x256xf32, #tpu.memory_space<vmem>>, vector<1x1x256xf32>
    tpu.vector_store %arg4[%c0_31, %c3, %c0_32], %84 {strides = array<i32>} : memref<1x6x256xf32, #tpu.memory_space<vmem>>, vector<1x1x256xf32>,
    %cst_33 = arith.constant dense<0.000000e+00> : vector<2x256xf32>
    %86 = vector.multi_reduction <add>, %1, %cst_33 [0] : vector<1x2x256xf32> to vector<2x256xf32>
    %87 = vector.shape_cast %86 : vector<2x256xf32> to vector<1x2x256xf32>
    %c0_34 = arith.constant 0 : index
    %c4 = arith.constant 4 : index
    %c0_35 = arith.constant 0 : index
    %88 = vector.load %arg4[%c0_34, %c4, %c0_35] : memref<1x6x256xf32, #tpu.memory_space<vmem>>, vector<1x2x256xf32>
    tpu.vector_store %arg4[%c0_34, %c4, %c0_35], %87 {strides = array<i32>} : memref<1x6x256xf32, #tpu.memory_space<vmem>>, vector<1x2x256xf32>,
    return
  }
  func.func @transform_0(%arg0: i32) -> (i32, i32, i32) {
    %c0_i32 = arith.constant 0 : i32
    %c0_i32_0 = arith.constant 0 : i32
    %c0_i32_1 = arith.constant 0 : i32
    return %arg0, %c0_i32, %c0_i32_0 : i32, i32, i32
  }
  func.func @transform_1(%arg0: i32) -> (i32, i32, i32) {
    %c0_i32 = arith.constant 0 : i32
    %c0_i32_0 = arith.constant 0 : i32
    %c0_i32_1 = arith.constant 0 : i32
    return %arg0, %c0_i32, %c0_i32_0 : i32, i32, i32
  }
  func.func @transform_2(%arg0: i32) -> (i32, i32, i32) {
    %c0_i32 = arith.constant 0 : i32
    %c0_i32_0 = arith.constant 0 : i32
    %c0_i32_1 = arith.constant 0 : i32
    return %arg0, %c0_i32, %c0_i32_0 : i32, i32, i32
  }
  func.func @transform_3(%arg0: i32) -> (i32, i32, i32) {
    %c0_i32 = arith.constant 0 : i32
    %c0_i32_0 = arith.constant 0 : i32
    %c0_i32_1 = arith.constant 0 : i32
    return %arg0, %c0_i32, %c0_i32_0 : i32, i32, i32
  }
}

</mosaic_0001>

<llo_original>
// kernel: tpu_custom_call.1
$region0: #{tpu_custom_call.1}
  #allocation0 [shape = 'u32[]', space=smem, size = 0x4, offset = 0x4, fixed_abs, tag = 'smem constant byte address 0x4 - core index']
  #allocation1 [shape = 'u32[144,128]{1,0:T(1,128)}', space=vmem, size = 0x12000, scoped, tag = 'internal scratch']
  %s0 = inlined_call_operand.hbm [shape: f32[2,128,256], index: 0, kind: input, shape index: {}]
  %s1 = inlined_call_operand.hbm [shape: f32[2,2,256], index: 1, kind: input, shape index: {}]
  %s2 = inlined_call_operand.hbm [shape: f32[2,2,128], index: 2, kind: output, shape index: {0}]
  %s3 = inlined_call_operand.vmem [shape: f32[2,6,256], index: 3, kind: output, shape index: {1}]
  %4 = xla_tuple %s2, %s3
  %s5 = sld [smem:[#allocation0]]
  $region57: #{tpu_custom_call.1} parent=0
    _
  %s7 = ssub.s32 1, %s5
  %s8 = scalar_select 0, %s7, %s5
  $region1: #{tpu_custom_call.1} parent=0
    #allocation2 [shape = 'u8[262144]{0}', space=vmem, size = 0x40000, scoped, tag = 'input window, operand 0']
    #allocation3 [shape = 's32[2]{0}', space=sflag, size = 0x8, scoped, tag = 'scoped memory for tpu_custom_call.1']
    #allocation4 [shape = 's32[2]{0}', space=sflag, size = 0x8, scoped, tag = 'scoped memory for tpu_custom_call.1']
    #allocation5 [shape = 'u8[4096]{0}', space=vmem, size = 0x1000, scoped, tag = 'input window, operand 1']
    #allocation6 [shape = 's32[2]{0}', space=sflag, size = 0x8, scoped, tag = 'scoped memory for tpu_custom_call.1']
    #allocation7 [shape = 'u8[2048]{0}', space=vmem, size = 0x800, scoped, tag = 'output window, operand 0']
    %9 = vsyncpa [#allocation3], 0
    %s10 = scalar_lea.sflag [#allocation3], 1
    %11 = vsyncpa %s10, 0
    %12 = vsyncpa [#allocation6], 0
    %s13 = scalar_lea.sflag [#allocation6], 1
    %14 = vsyncpa %s13, 0
    %15 = vsyncpa [#allocation4], 0
    %s16 = scalar_lea.sflag [#allocation4], 1
    %17 = vsyncpa %s16, 0
    loop: start=0, step=1, limit=4
    $region2: #{tpu_custom_call.1} parent=1 // loop_pre_header
      _
    $region3: #{tpu_custom_call.1} parent=1 // loop_header
      %s19 = sphi 0, %s23
      %p20 = scmp.ge.s32.totalorder %s19, 4
      %s29 = sphi 0, %s31
      %s32 = sphi 0, %s29
      %s33 = sphi 0, %s32
      %s49 = sphi 0, %s33
      %s55 = sphi 0, %s57
      %s58 = sphi 0, %s55
      %s59 = sphi 0, %s58
      %s75 = sphi 0, %s59
      %s81 = sphi 0, %s83
      %s84 = sphi 0, %s81
      %s85 = sphi 0, %s84
      %s101 = sphi 0, %s85
      %s107 = sphi 0, %s109
      %s110 = sphi 0, %s107
      %s111 = sphi 0, %s110
      %s127 = sphi 0, %s111
    $region4: #{tpu_custom_call.1} parent=1 // loop_header_branch
      %22 = sbr.rel (%p20) target = $region8
    $region5: #{tpu_custom_call.1} parent=1 // loop_body
      %s24 = ssub.s32 %s19, 1
      %s25 = ssub.s32 %s19, 2
      %s26 = sadd.s32 %s19, 1
      %s27 = ssub.s32 %s19, %s26
      %p28 = scmp.eq.s32.totalorder %s27, 0
      %s30 = sadd.s32 %s29, 1
      %s31 = scalar_select %p28, %s29, %s30
      %p34 = pneg %p28
      %p35 = scmp.eq.s32.totalorder %s19, 1
      %p36 = por %p34, %p35
      %p37 = scmp.ne.s32.totalorder %s29, %s32
      %p38 = scmp.eq.s32.totalorder %s19, 0
      %p39 = por %p37, %p38
      %p40 = scmp.ne.s32.totalorder %s29, %s32
      %p41 = scmp.eq.s32.totalorder %s24, 1
      %p42 = por %p40, %p41
      %p43 = scmp.ne.s32.totalorder %s32, %s33
      %p44 = scmp.eq.s32.totalorder %s24, 0
      %p45 = por %p43, %p44
      %p46 = scmp.ne.s32.totalorder %s32, %s33
      %p47 = scmp.eq.s32.totalorder %s25, 1
      %p48 = por %p46, %p47
      %p50 = scmp.ne.s32.totalorder %s33, %s49
      %p51 = scmp.eq.s32.totalorder %s25, 0
      %p52 = por %p50, %p51
      %s53 = ssub.s32 %s19, %s26
      %p54 = scmp.eq.s32.totalorder %s53, 0
      %s56 = sadd.s32 %s55, 1
      %s57 = scalar_select %p54, %s55, %s56
      %p60 = pneg %p54
      %p61 = scmp.eq.s32.totalorder %s19, 1
      %p62 = por %p60, %p61
      %p63 = scmp.ne.s32.totalorder %s55, %s58
      %p64 = scmp.eq.s32.totalorder %s19, 0
      %p65 = por %p63, %p64
      %p66 = scmp.ne.s32.totalorder %s55, %s58
      %p67 = scmp.eq.s32.totalorder %s24, 1
      %p68 = por %p66, %p67
      %p69 = scmp.ne.s32.totalorder %s58, %s59
      %p70 = scmp.eq.s32.totalorder %s24, 0
      %p71 = por %p69, %p70
      %p72 = scmp.ne.s32.totalorder %s58, %s59
      %p73 = scmp.eq.s32.totalorder %s25, 1
      %p74 = por %p72, %p73
      %p76 = scmp.ne.s32.totalorder %s59, %s75
      %p77 = scmp.eq.s32.totalorder %s25, 0
      %p78 = por %p76, %p77
      %s79 = ssub.s32 %s19, %s26
      %p80 = scmp.eq.s32.totalorder %s79, 0
      %s82 = sadd.s32 %s81, 1
      %s83 = scalar_select %p80, %s81, %s82
      %p86 = pneg %p80
      %p87 = scmp.eq.s32.totalorder %s19, 1
      %p88 = por %p86, %p87
      %p89 = scmp.ne.s32.totalorder %s81, %s84
      %p90 = scmp.eq.s32.totalorder %s19, 0
      %p91 = por %p89, %p90
      %p92 = scmp.ne.s32.totalorder %s81, %s84
      %p93 = scmp.eq.s32.totalorder %s24, 1
      %p94 = por %p92, %p93
      %p95 = scmp.ne.s32.totalorder %s84, %s85
      %p96 = scmp.eq.s32.totalorder %s24, 0
      %p97 = por %p95, %p96
      %p98 = scmp.ne.s32.totalorder %s84, %s85
      %p99 = scmp.eq.s32.totalorder %s25, 1
      %p100 = por %p98, %p99
      %p102 = scmp.ne.s32.totalorder %s85, %s101
      %p103 = scmp.eq.s32.totalorder %s25, 0
      %p104 = por %p102, %p103
      %s105 = ssub.s32 %s19, %s26
      %p106 = scmp.eq.s32.totalorder %s105, 0
      %s108 = sadd.s32 %s107, 1
      %s109 = scalar_select %p106, %s107, %s108
      %p112 = pneg %p106
      %p113 = scmp.eq.s32.totalorder %s19, 1
      %p114 = por %p112, %p113
      %p115 = scmp.ne.s32.totalorder %s107, %s110
      %p116 = scmp.eq.s32.totalorder %s19, 0
      %p117 = por %p115, %p116
      %p118 = scmp.ne.s32.totalorder %s107, %s110
      %p119 = scmp.eq.s32.totalorder %s24, 1
      %p120 = por %p118, %p119
      %p121 = scmp.ne.s32.totalorder %s110, %s111
      %p122 = scmp.eq.s32.totalorder %s24, 0
      %p123 = por %p121, %p122
      %p124 = scmp.ne.s32.totalorder %s110, %s111
      %p125 = scmp.eq.s32.totalorder %s25, 1
      %p126 = por %p124, %p125
      %p128 = scmp.ne.s32.totalorder %s111, %s127
      %p129 = scmp.eq.s32.totalorder %s25, 0
      %p130 = por %p128, %p129
      %p131 = scmp.le.s32.totalorder 1, %s19
      %p132 = scmp.lt.s32.totalorder %s19, 3
      %p133 = pnand %p131, %p132
      %p134 = pneg %p133
      // Predicated region
      $region9: #{tpu_custom_call.1} parent=5 // pred_check
        _
      $region10: #{tpu_custom_call.1} parent=5 // pred_check_branch
        %136 = sbr.rel (%p133) target = $region12
      $region11: #{tpu_custom_call.1} parent=5 // pred_region
        %s137 = ssub.s32 %s19, 1
      $region12: #{tpu_custom_call.1} parent=5 // pred_fallthru
        _
      %p138 = scmp.lt.s32.totalorder %s19, 2
      // Predicated region
      $region13: #{tpu_custom_call.1} parent=5 // pred_check
        %p139 = pneg %p138
      $region14: #{tpu_custom_call.1} parent=5 // pred_check_branch
        %141 = sbr.rel (%p139) target = $region16
      $region15: #{tpu_custom_call.1} parent=5 // pred_region
        // Predicated region
        $region17: #{tpu_custom_call.1} parent=15 // pred_check
          %p142 = pneg %p39
        $region18: #{tpu_custom_call.1} parent=15 // pred_check_branch
          %144 = sbr.rel (%p142) target = $region20
        $region19: #{tpu_custom_call.1} parent=15 // pred_region
          %s145 = sand.u32 %s29, 1
          %s146 = scalar_lea.sflag [#allocation3], %s145
          %s147 = sand.u32 %s29, 1
          %s148 = smul.addr %s147, 256
          %s149 = scalar_lea.vmem [#allocation2], %s148
          %s151 = ssub.s32 4096, 4096
          %152 = vsyncadd %s146, %s151
          %s153 = smul.addr %s19, 32
          %s154 = smul.addr %s153, 128
          %s155 = scalar_lea.hbm %s0, %s154
          %s156 = sshll.u32 %s149, 4
          %s157 = int_to_ptr.vmem [resolvable:$true] %s156
          %162 = dma.hbm_to_vmem [thread:$0]  %s155, 4096, %s157, %s146, 256, 256, 16
        $region20: #{tpu_custom_call.1} parent=15 // pred_fallthru
          _
        // Predicated region
        $region21: #{tpu_custom_call.1} parent=15 // pred_check
          %p163 = pneg %p65
        $region22: #{tpu_custom_call.1} parent=15 // pred_check_branch
          %165 = sbr.rel (%p163) target = $region24
        $region23: #{tpu_custom_call.1} parent=15 // pred_region
          %s166 = sand.u32 %s55, 1
          %s167 = scalar_lea.sflag [#allocation6], %s166
          %s168 = sand.u32 %s55, 1
          %s169 = smul.addr %s168, 4
          %s170 = scalar_lea.vmem [#allocation5], %s169
          %s172 = ssub.s32 64, 64
          %173 = vsyncadd %s167, %s172
          %s174 = smul.addr %s19, 2
          %s175 = smul.addr %s174, 32
          %s176 = scalar_lea.hbm %s1, %s175
          %s178 = sshll.u32 %s170, 4
          %s179 = int_to_ptr.vmem [resolvable:$true] %s178
          %181 = dma.hbm_to_vmem [thread:$0]  %s176, 64, %s179, %s167
        $region24: #{tpu_custom_call.1} parent=15 // pred_fallthru
          _
      $region16: #{tpu_custom_call.1} parent=5 // pred_fallthru
        _
      %p182 = scmp.le.s32.totalorder 1, %s19
      %p183 = scmp.lt.s32.totalorder %s19, 3
      %p184 = pnand %p182, %p183
      %p185 = pneg %p184
      // Predicated region
      $region25: #{tpu_custom_call.1} parent=5 // pred_check
        _
      $region26: #{tpu_custom_call.1} parent=5 // pred_check_branch
        %187 = sbr.rel (%p184) target = $region28
      $region27: #{tpu_custom_call.1} parent=5 // pred_region
        %s188 = ssub.s32 %s19, 1
        %s189 = sand.u32 %s32, 1
        %s190 = scalar_lea.sflag [#allocation3], %s189
        %s191 = sand.u32 %s32, 1
        %s192 = smul.addr %s191, 256
        %s193 = scalar_lea.vmem [#allocation2], %s192
        // Predicated region
        $region29: #{tpu_custom_call.1} parent=27 // pred_check
          %p194 = pneg %p45
        $region30: #{tpu_custom_call.1} parent=27 // pred_check_branch
          %196 = sbr.rel (%p194) target = $region32
        $region31: #{tpu_custom_call.1} parent=27 // pred_region
          %197 = dma.done %s190, 4096
        $region32: #{tpu_custom_call.1} parent=27 // pred_fallthru
          _
        %s198 = sand.u32 %s58, 1
        %s199 = scalar_lea.sflag [#allocation6], %s198
        %s200 = sand.u32 %s58, 1
        %s201 = smul.addr %s200, 4
        %s202 = scalar_lea.vmem [#allocation5], %s201
        // Predicated region
        $region33: #{tpu_custom_call.1} parent=27 // pred_check
          %p203 = pneg %p71
        $region34: #{tpu_custom_call.1} parent=27 // pred_check_branch
          %205 = sbr.rel (%p203) target = $region36
        $region35: #{tpu_custom_call.1} parent=27 // pred_region
          %206 = dma.done %s199, 64
        $region36: #{tpu_custom_call.1} parent=27 // pred_fallthru
          _
        %s207 = sand.u32 %s32, 1
        %s208 = scalar_lea.sflag [#allocation3], %s207
        %s209 = sand.u32 %s32, 1
        %s210 = smul.addr %s209, 256
        %s211 = scalar_lea.vmem [#allocation2], %s210
        %p212 = pneg %p45
        %p213 = pneg %p42
        %s214 = sand.u32 %s58, 1
        %s215 = scalar_lea.sflag [#allocation6], %s214
        %s216 = sand.u32 %s58, 1
        %s217 = smul.addr %s216, 4
        %s218 = scalar_lea.vmem [#allocation5], %s217
        %p219 = pneg %p71
        %p220 = pneg %p68
        %p221 = pneg %p97
        %p222 = pneg %p94
        %s223 = sand.u32 %s84, 1
        %s224 = scalar_lea.sflag [#allocation4], %s223
        %s225 = sand.u32 %s84, 1
        %s226 = smul.addr %s225, 2
        %s227 = scalar_lea.vmem [#allocation7], %s226
        %p228 = pneg %p123
        %p229 = pneg %p120
        %p230 = scmp.lt.s32.totalorder %s24, 1
        %s231 = scalar_select %p230, %s24, 1
        %s232 = smul.addr %s231, 2
        %s233 = smul.addr %s232, 8
        %s234 = scalar_lea.vmem %s3, %s233
        %p235 = scmp.lt.s32.totalorder %s24, 1
        %s236 = scalar_select %p235, %s24, 1
        %s237 = smul.addr %s236, 2
        %s238 = smul.addr %s237, 8
        %s239 = scalar_lea.vmem %s3, %s238
        %v240 = vld [vmem:[%s193] sm:$0xff]
        %v241 = vld [vmem:[%s193 + $0x8] sm:$0xff]
        %v242 = vld [vmem:[%s193 + $0x10] sm:$0xff]
        %v243 = vld [vmem:[%s193 + $0x18] sm:$0xff]
        %v244 = vld [vmem:[%s193 + $0x20] sm:$0xff]
        %v245 = vld [vmem:[%s193 + $0x28] sm:$0xff]
        %v246 = vld [vmem:[%s193 + $0x30] sm:$0xff]
        %v247 = vld [vmem:[%s193 + $0x38] sm:$0xff]
        %v248 = vld [vmem:[%s193 + $0x40] sm:$0xff]
        %v249 = vld [vmem:[%s193 + $0x48] sm:$0xff]
        %v250 = vld [vmem:[%s193 + $0x50] sm:$0xff]
        %v251 = vld [vmem:[%s193 + $0x58] sm:$0xff]
        %v252 = vld [vmem:[%s193 + $0x60] sm:$0xff]
        %v253 = vld [vmem:[%s193 + $0x68] sm:$0xff]
        %v254 = vld [vmem:[%s193 + $0x70] sm:$0xff]
        %v255 = vld [vmem:[%s193 + $0x78] sm:$0xff]
        %v256 = vld [vmem:[%s193 + $0x80] sm:$0xff]
        %v257 = vld [vmem:[%s193 + $0x88] sm:$0xff]
        %v258 = vld [vmem:[%s193 + $0x90] sm:$0xff]
        %v259 = vld [vmem:[%s193 + $0x98] sm:$0xff]
        %v260 = vld [vmem:[%s193 + $0xa0] sm:$0xff]
        %v261 = vld [vmem:[%s193 + $0xa8] sm:$0xff]
        %v262 = vld [vmem:[%s193 + $0xb0] sm:$0xff]
        %v263 = vld [vmem:[%s193 + $0xb8] sm:$0xff]
        %v264 = vld [vmem:[%s193 + $0xc0] sm:$0xff]
        %v265 = vld [vmem:[%s193 + $0xc8] sm:$0xff]
        %v266 = vld [vmem:[%s193 + $0xd0] sm:$0xff]
        %v267 = vld [vmem:[%s193 + $0xd8] sm:$0xff]
        %v268 = vld [vmem:[%s193 + $0xe0] sm:$0xff]
        %v269 = vld [vmem:[%s193 + $0xe8] sm:$0xff]
        %v270 = vld [vmem:[%s193 + $0xf0] sm:$0xff]
        %v271 = vld [vmem:[%s193 + $0xf8] sm:$0xff]
        %v272 = vld [vmem:[%s202] sm:$0xf]
        %v275 = vunpack.c.l.s4 1983009808
        %v276 = vunpack.c.0.s8 %v275
        %v277 = vlaneseq
        %v278 = vshrl.u32 %v277, 7
        %v279 = vsub.s32 %v276, %v278
        %v280 = vrot.slane %v272, %v279
        %v281 = vcombine.high %v280, %v280
        %284 = vmatprep.subr.mxu0 %v241
        %285 = vmatpush1.xpose.msra.mxu0 %v240
        %286 = vmatprep.subr.mxu0 %v243
        %287 = vmatpush1.xpose.msra.mxu0 %v242
        %288 = vmatprep.subr.mxu0 %v245
        %289 = vmatpush1.xpose.msra.mxu0 %v244
        %290 = vmatprep.subr.mxu0 %v247
        %291 = vmatpush1.xpose.msra.mxu0 %v246
        %292 = vmatprep.subr.mxu0 %v249
        %293 = vmatpush1.xpose.msra.mxu0 %v248
        %294 = vmatprep.subr.mxu0 %v251
        %295 = vmatpush1.xpose.msra.mxu0 %v250
        %296 = vmatprep.subr.mxu0 %v253
        %297 = vmatpush1.xpose.msra.mxu0 %v252
        %298 = vmatprep.subr.mxu0 %v255
        %299 = vmatpush1.xpose.msra.mxu0 %v254
        %300 = vmatprep.subr.mxu0 %v257
        %301 = vmatpush1.xpose.msra.mxu0 %v256
        %302 = vmatprep.subr.mxu0 %v259
        %303 = vmatpush1.xpose.msra.mxu0 %v258
        %304 = vmatprep.subr.mxu0 %v261
        %305 = vmatpush1.xpose.msra.mxu0 %v260
        %306 = vmatprep.subr.mxu0 %v263
        %307 = vmatpush1.xpose.msra.mxu0 %v262
        %308 = vmatprep.subr.mxu0 %v265
        %309 = vmatpush1.xpose.msra.mxu0 %v264
        %310 = vmatprep.subr.mxu0 %v267
        %311 = vmatpush1.xpose.msra.mxu0 %v266
        %312 = vmatprep.subr.mxu0 %v269
        %313 = vmatpush1.xpose.msra.mxu0 %v268
        %314 = vmatprep.subr.mxu0 %v271
        %315 = vmatpush1.xpose.msra.mxu0 %v270
        %316 = vmatprep.subr.mxu0 0.0
        %317 = vmatpush1.xpose.msra.mxu0 0.0
        %318 = vmatprep.subr.mxu0 0.0
        %319 = vmatpush1.xpose.msra.mxu0 0.0
        %320 = vmatprep.subr.mxu0 0.0
        %321 = vmatpush1.xpose.msra.mxu0 0.0
        %322 = vmatprep.subr.mxu0 0.0
        %323 = vmatpush1.xpose.msra.mxu0 0.0
        %324 = vmatprep.subr.mxu0 0.0
        %325 = vmatpush1.xpose.msra.mxu0 0.0
        %326 = vmatprep.subr.mxu0 0.0
        %327 = vmatpush1.xpose.msra.mxu0 0.0
        %328 = vmatprep.subr.mxu0 0.0
        %329 = vmatpush1.xpose.msra.mxu0 0.0
        %330 = vmatprep.subr.mxu0 0.0
        %331 = vmatpush1.xpose.msra.mxu0 0.0
        %332 = vmatprep.subr.mxu0 0.0
        %333 = vmatpush1.xpose.msra.mxu0 0.0
        %334 = vmatprep.subr.mxu0 0.0
        %335 = vmatpush1.xpose.msra.mxu0 0.0
        %336 = vmatprep.subr.mxu0 0.0
        %337 = vmatpush1.xpose.msra.mxu0 0.0
        %338 = vmatprep.subr.mxu0 0.0
        %339 = vmatpush1.xpose.msra.mxu0 0.0
        %340 = vmatprep.subr.mxu0 0.0
        %341 = vmatpush1.xpose.msra.mxu0 0.0
        %342 = vmatprep.subr.mxu0 0.0
        %343 = vmatpush1.xpose.msra.mxu0 0.0
        %344 = vmatprep.subr.mxu0 0.0
        %345 = vmatpush1.xpose.msra.mxu0 0.0
        %346 = vmatprep.subr.mxu0 0.0
        %347 = vmatpush1.xpose.msra.mxu0 0.0
        %348 = vmatprep.mubr.f32.mxu0 %v281
        %349 = vmatmul.mubr.f32.gmra.mrb[0].mxu0 %v280
        %v350 = vpop.f32.mrb[0].mxu0
        %v351 = vadd.f32 0.0, %v350
        %v352 = vpop.f32.mrb[0].mxu0
        %353 = vdwg.mxu0
        %vm354 = vcmask 1041408
        %v355 = vsel %vm354, %v280, 0.0
        %v356 = vsel %vm354, %v281, 0.0
        %v357 = vadd.f32 %v355, %v356
        %358 = vadd.xlane.f32.xlu0 %v357
        %v359 = vpop.xlane.xlu0 %358
        %v360 = vadd.f32 %v359, 1e-06
        %v361 = vrcp.pop %v360
        %v362 = vmul.f32 %v351, %v361
        %363 = vst [vmem:[%s227] sm:$0x3] %v362
        %v364 = vlaneseq
        %v365 = vand.u32 %v364, 127
        %v366 = vadd.s32 %v365, 128
        %367 = vrot.lane.b32.xlu0 %v365, 127
        %v368 = vpop.permute.xlu0 %367
        %369 = vrot.lane.b32.xlu0 %v366, 127
        %v370 = vpop.permute.xlu0 %369
        %vm371 = vcmp.lt.s32.totalorder %v365, 127
        %v372 = vsel %vm371, %v368, %v370
        %v373 = vsel %vm371, %v370, %v368
        %374 = vrot.lane.b32.xlu0 %v365, 112
        %v375 = vpop.permute.xlu0 %374
        %376 = vrot.lane.b32.xlu0 %v366, 112
        %v377 = vpop.permute.xlu0 %376
        %vm378 = vcmp.lt.s32.totalorder %v365, 112
        %v379 = vsel %vm378, %v375, %v377
        %v380 = vsel %vm378, %v377, %v375
        %v381 = vsub.s32 %v372, %v365
        %v382 = vsub.s32 %v373, %v366
        %vm383 = vcmp.lt.s32.totalorder %v381, 0
        %v384 = vsub.s32 0, %v381
        %v385 = vsel %vm383, %v384, %v381
        %vm386 = vcmp.lt.s32.totalorder %v382, 0
        %v387 = vsub.s32 0, %v382
        %v388 = vsel %vm386, %v387, %v382
        %vm389 = vcmp.eq.s32.totalorder %v385, 1
        %vm390 = vcmp.eq.s32.totalorder %v388, 1
        %vm391 = vcmp.lt.s32.totalorder %v365, %v372
        %v392 = vsel %vm391, %v365, %v372
        %vm393 = vcmp.lt.s32.totalorder %v366, %v373
        %v394 = vsel %vm393, %v366, %v373
        %vm395 = vcmp.lt.s32.totalorder %v392, 0
        %v396 = vsub.s32 0, %v392
        %v397 = vsel %vm395, %v396, %v392
        %v398 = vshrl.u32 %v397, 4
        %v399 = vand.u32 %v397, 15
        %v400 = vsub.s32 0, %v399
        %v401 = vsel %vm395, %v400, %v399
        %vm402 = vcmp.lt.s32.totalorder %v394, 0
        %v403 = vsub.s32 0, %v394
        %v404 = vsel %vm402, %v403, %v394
        %v405 = vshrl.u32 %v404, 4
        %v406 = vand.u32 %v404, 15
        %v407 = vsub.s32 0, %v406
        %v408 = vsel %vm402, %v407, %v406
        %vm409 = vcmp.ne.s32.totalorder %v401, 0
        %vm410 = vcmp.ne.s32.totalorder %v408, 0
        %vm411 = vcmp.lt.s32.totalorder %v401, 0
        %vm412 = vcmp.lt.s32.totalorder %v408, 0
        %vm413 = vmand %vm411, %vm409
        %vm414 = vmand %vm412, %vm410
        %v415 = vadd.s32 %v401, 16
        %v416 = vadd.s32 %v408, 16
        %v417 = vsel %vm413, %v415, %v401
        %v418 = vsel %vm414, %v416, %v408
        %vm419 = vcmp.ne.s32.totalorder %v417, 15
        %vm420 = vcmp.ne.s32.totalorder %v418, 15
        %vm421 = vmand %vm389, %vm419
        %vm422 = vmand %vm390, %vm420
        %vm423 = vcmp.gt.s32.totalorder %v365, %v372
        %v424 = vsel %vm423, %v365, %v372
        %vm425 = vcmp.gt.s32.totalorder %v366, %v373
        %v426 = vsel %vm425, %v366, %v373
        %vm427 = vcmp.lt.s32.totalorder %v424, 256
        %vm428 = vcmp.lt.s32.totalorder %v426, 256
        %vm429 = vmand %vm421, %vm427
        %vm430 = vmand %vm422, %vm428
        %v431 = vsub.s32 %v379, %v365
        %v432 = vsub.s32 %v380, %v366
        %vm433 = vcmp.lt.s32.totalorder %v431, 0
        %v434 = vsub.s32 0, %v431
        %v435 = vsel %vm433, %v434, %v431
        %vm436 = vcmp.lt.s32.totalorder %v432, 0
        %v437 = vsub.s32 0, %v432
        %v438 = vsel %vm436, %v437, %v432
        %vm439 = vcmp.eq.s32.totalorder %v435, 16
        %vm440 = vcmp.eq.s32.totalorder %v438, 16
        %vm441 = vcmp.gt.s32.totalorder %v365, %v379
        %v442 = vsel %vm441, %v365, %v379
        %vm443 = vcmp.gt.s32.totalorder %v366, %v380
        %v444 = vsel %vm443, %v366, %v380
        %vm445 = vcmp.lt.s32.totalorder %v442, 256
        %vm446 = vcmp.lt.s32.totalorder %v444, 256
        %vm447 = vmand %vm439, %vm445
        %vm448 = vmand %vm440, %vm446
        %v449 = vsel %vm429, 1, 0
        %v450 = vsel %vm430, 1, 0
        %v451 = vcvt.s32.f32 %v449
        %v452 = vcvt.s32.f32 %v450
        %v453 = vsel %vm447, 1, 0
        %v454 = vsel %vm448, 1, 0
        %v455 = vcvt.s32.f32 %v453
        %v456 = vcvt.s32.f32 %v454
        %457 = vrot.lane.b32.xlu0 %v240, 127
        %v458 = vpop.permute.xlu0 %457
        %459 = vrot.lane.b32.xlu0 %v242, 127
        %v460 = vpop.permute.xlu0 %459
        %461 = vrot.lane.b32.xlu0 %v244, 127
        %v462 = vpop.permute.xlu0 %461
        %463 = vrot.lane.b32.xlu0 %v246, 127
        %v464 = vpop.permute.xlu0 %463
        %465 = vrot.lane.b32.xlu0 %v248, 127
        %v466 = vpop.permute.xlu0 %465
        %467 = vrot.lane.b32.xlu0 %v250, 127
        %v468 = vpop.permute.xlu0 %467
        %469 = vrot.lane.b32.xlu0 %v252, 127
        %v470 = vpop.permute.xlu0 %469
        %471 = vrot.lane.b32.xlu0 %v254, 127
        %v472 = vpop.permute.xlu0 %471
        %473 = vrot.lane.b32.xlu0 %v256, 127
        %v474 = vpop.permute.xlu0 %473
        %475 = vrot.lane.b32.xlu0 %v258, 127
        %v476 = vpop.permute.xlu0 %475
        %477 = vrot.lane.b32.xlu0 %v260, 127
        %v478 = vpop.permute.xlu0 %477
        %479 = vrot.lane.b32.xlu0 %v262, 127
        %v480 = vpop.permute.xlu0 %479
        %481 = vrot.lane.b32.xlu0 %v264, 127
        %v482 = vpop.permute.xlu0 %481
        %483 = vrot.lane.b32.xlu0 %v266, 127
        %v484 = vpop.permute.xlu0 %483
        %485 = vrot.lane.b32.xlu0 %v268, 127
        %v486 = vpop.permute.xlu0 %485
        %487 = vrot.lane.b32.xlu0 %v270, 127
        %v488 = vpop.permute.xlu0 %487
        %489 = vrot.lane.b32.xlu0 %v241, 127
        %v490 = vpop.permute.xlu0 %489
        %491 = vrot.lane.b32.xlu0 %v243, 127
        %v492 = vpop.permute.xlu0 %491
        %493 = vrot.lane.b32.xlu0 %v245, 127
        %v494 = vpop.permute.xlu0 %493
        %495 = vrot.lane.b32.xlu0 %v247, 127
        %v496 = vpop.permute.xlu0 %495
        %497 = vrot.lane.b32.xlu0 %v249, 127
        %v498 = vpop.permute.xlu0 %497
        %499 = vrot.lane.b32.xlu0 %v251, 127
        %v500 = vpop.permute.xlu0 %499
        %501 = vrot.lane.b32.xlu0 %v253, 127
        %v502 = vpop.permute.xlu0 %501
        %503 = vrot.lane.b32.xlu0 %v255, 127
        %v504 = vpop.permute.xlu0 %503
        %505 = vrot.lane.b32.xlu0 %v257, 127
        %v506 = vpop.permute.xlu0 %505
        %507 = vrot.lane.b32.xlu0 %v259, 127
        %v508 = vpop.permute.xlu0 %507
        %509 = vrot.lane.b32.xlu0 %v261, 127
        %v510 = vpop.permute.xlu0 %509
        %511 = vrot.lane.b32.xlu0 %v263, 127
        %v512 = vpop.permute.xlu0 %511
        %513 = vrot.lane.b32.xlu0 %v265, 127
        %v514 = vpop.permute.xlu0 %513
        %515 = vrot.lane.b32.xlu0 %v267, 127
        %v516 = vpop.permute.xlu0 %515
        %517 = vrot.lane.b32.xlu0 %v269, 127
        %v518 = vpop.permute.xlu0 %517
        %519 = vrot.lane.b32.xlu0 %v271, 127
        %v520 = vpop.permute.xlu0 %519
        %v521 = vsel %vm371, %v458, %v490
        %v522 = vsel %vm371, %v460, %v492
        %v523 = vsel %vm371, %v462, %v494
        %v524 = vsel %vm371, %v464, %v496
        %v525 = vsel %vm371, %v466, %v498
        %v526 = vsel %vm371, %v468, %v500
        %v527 = vsel %vm371, %v470, %v502
        %v528 = vsel %vm371, %v472, %v504
        %v529 = vsel %vm371, %v474, %v506
        %v530 = vsel %vm371, %v476, %v508
        %v531 = vsel %vm371, %v478, %v510
        %v532 = vsel %vm371, %v480, %v512
        %v533 = vsel %vm371, %v482, %v514
        %v534 = vsel %vm371, %v484, %v516
        %v535 = vsel %vm371, %v486, %v518
        %v536 = vsel %vm371, %v488, %v520
        %v537 = vsel %vm371, %v490, %v458
        %v538 = vsel %vm371, %v492, %v460
        %v539 = vsel %vm371, %v494, %v462
        %v540 = vsel %vm371, %v496, %v464
        %v541 = vsel %vm371, %v498, %v466
        %v542 = vsel %vm371, %v500, %v468
        %v543 = vsel %vm371, %v502, %v470
        %v544 = vsel %vm371, %v504, %v472
        %v545 = vsel %vm371, %v506, %v474
        %v546 = vsel %vm371, %v508, %v476
        %v547 = vsel %vm371, %v510, %v478
        %v548 = vsel %vm371, %v512, %v480
        %v549 = vsel %vm371, %v514, %v482
        %v550 = vsel %vm371, %v516, %v484
        %v551 = vsel %vm371, %v518, %v486
        %v552 = vsel %vm371, %v520, %v488
        %v553 = vsub.f32 %v240, %v521
        %v554 = vsub.f32 %v241, %v537
        %v555 = vsub.f32 %v242, %v522
        %v556 = vsub.f32 %v243, %v538
        %v557 = vsub.f32 %v244, %v523
        %v558 = vsub.f32 %v245, %v539
        %v559 = vsub.f32 %v246, %v524
        %v560 = vsub.f32 %v247, %v540
        %v561 = vsub.f32 %v248, %v525
        %v562 = vsub.f32 %v249, %v541
        %v563 = vsub.f32 %v250, %v526
        %v564 = vsub.f32 %v251, %v542
        %v565 = vsub.f32 %v252, %v527
        %v566 = vsub.f32 %v253, %v543
        %v567 = vsub.f32 %v254, %v528
        %v568 = vsub.f32 %v255, %v544
        %v569 = vsub.f32 %v256, %v529
        %v570 = vsub.f32 %v257, %v545
        %v571 = vsub.f32 %v258, %v530
        %v572 = vsub.f32 %v259, %v546
        %v573 = vsub.f32 %v260, %v531
        %v574 = vsub.f32 %v261, %v547
        %v575 = vsub.f32 %v262, %v532
        %v576 = vsub.f32 %v263, %v548
        %v577 = vsub.f32 %v264, %v533
        %v578 = vsub.f32 %v265, %v549
        %v579 = vsub.f32 %v266, %v534
        %v580 = vsub.f32 %v267, %v550
        %v581 = vsub.f32 %v268, %v535
        %v582 = vsub.f32 %v269, %v551
        %v583 = vsub.f32 %v270, %v536
        %v584 = vsub.f32 %v271, %v552
        %v585 = vand.u32 2147483647, %v553
        %v586 = vand.u32 2147483647, %v554
        %v587 = vand.u32 2147483647, %v555
        %v588 = vand.u32 2147483647, %v556
        %v589 = vand.u32 2147483647, %v557
        %v590 = vand.u32 2147483647, %v558
        %v591 = vand.u32 2147483647, %v559
        %v592 = vand.u32 2147483647, %v560
        %v593 = vand.u32 2147483647, %v561
        %v594 = vand.u32 2147483647, %v562
        %v595 = vand.u32 2147483647, %v563
        %v596 = vand.u32 2147483647, %v564
        %v597 = vand.u32 2147483647, %v565
        %v598 = vand.u32 2147483647, %v566
        %v599 = vand.u32 2147483647, %v567
        %v600 = vand.u32 2147483647, %v568
        %v601 = vand.u32 2147483647, %v569
        %v602 = vand.u32 2147483647, %v570
        %v603 = vand.u32 2147483647, %v571
        %v604 = vand.u32 2147483647, %v572
        %v605 = vand.u32 2147483647, %v573
        %v606 = vand.u32 2147483647, %v574
        %v607 = vand.u32 2147483647, %v575
        %v608 = vand.u32 2147483647, %v576
        %v609 = vand.u32 2147483647, %v577
        %v610 = vand.u32 2147483647, %v578
        %v611 = vand.u32 2147483647, %v579
        %v612 = vand.u32 2147483647, %v580
        %v613 = vand.u32 2147483647, %v581
        %v614 = vand.u32 2147483647, %v582
        %v615 = vand.u32 2147483647, %v583
        %v616 = vand.u32 2147483647, %v584
        %v617 = vlaneseq
        %v618 = vshrl.u32 %v617, 7
        %v619 = vsub.s32 0, %v618
        %v620 = vrot.slane %v451, %v619
        %v621 = vlaneseq
        %v622 = vshrl.u32 %v621, 7
        %v623 = vsub.s32 0, %v622
        %v624 = vrot.slane %v452, %v623
        %v625 = vmul.f32 %v585, %v620
        %v626 = vmul.f32 %v586, %v624
        %v627 = vmul.f32 %v587, %v620
        %v628 = vmul.f32 %v588, %v624
        %v629 = vmul.f32 %v589, %v620
        %v630 = vmul.f32 %v590, %v624
        %v631 = vmul.f32 %v591, %v620
        %v632 = vmul.f32 %v592, %v624
        %v633 = vmul.f32 %v593, %v620
        %v634 = vmul.f32 %v594, %v624
        %v635 = vmul.f32 %v595, %v620
        %v636 = vmul.f32 %v596, %v624
        %v637 = vmul.f32 %v597, %v620
        %v638 = vmul.f32 %v598, %v624
        %v639 = vmul.f32 %v599, %v620
        %v640 = vmul.f32 %v600, %v624
        %v641 = vmul.f32 %v601, %v620
        %v642 = vmul.f32 %v602, %v624
        %v643 = vmul.f32 %v603, %v620
        %v644 = vmul.f32 %v604, %v624
        %v645 = vmul.f32 %v605, %v620
        %v646 = vmul.f32 %v606, %v624
        %v647 = vmul.f32 %v607, %v620
        %v648 = vmul.f32 %v608, %v624
        %v649 = vmul.f32 %v609, %v620
        %v650 = vmul.f32 %v610, %v624
        %v651 = vmul.f32 %v611, %v620
        %v652 = vmul.f32 %v612, %v624
        %v653 = vmul.f32 %v613, %v620
        %v654 = vmul.f32 %v614, %v624
        %v655 = vmul.f32 %v615, %v620
        %v656 = vmul.f32 %v616, %v624
        %v657 = vadd.f32 %v625, %v627
        %v658 = vadd.f32 %v657, %v629
        %v659 = vadd.f32 %v658, %v631
        %v660 = vadd.f32 %v659, %v633
        %v661 = vadd.f32 %v660, %v635
        %v662 = vadd.f32 %v661, %v637
        %v663 = vadd.f32 %v662, %v639
        %v664 = vadd.f32 %v663, %v641
        %v665 = vadd.f32 %v664, %v643
        %v666 = vadd.f32 %v665, %v645
        %v667 = vadd.f32 %v666, %v647
        %v668 = vadd.f32 %v667, %v649
        %v669 = vadd.f32 %v668, %v651
        %v670 = vadd.f32 %v669, %v653
        %v671 = vadd.f32 %v670, %v655
        %v672 = vrot.slane %v671, 4
        %v673 = vadd.f32 %v671, %v672
        %v674 = vrot.slane %v673, 2
        %v675 = vadd.f32 %v673, %v674
        %v676 = vrot.slane %v675, 1
        %v677 = vadd.f32 %v675, %v676
        %v678 = vadd.f32 %v626, %v628
        %v679 = vadd.f32 %v678, %v630
        %v680 = vadd.f32 %v679, %v632
        %v681 = vadd.f32 %v680, %v634
        %v682 = vadd.f32 %v681, %v636
        %v683 = vadd.f32 %v682, %v638
        %v684 = vadd.f32 %v683, %v640
        %v685 = vadd.f32 %v684, %v642
        %v686 = vadd.f32 %v685, %v644
        %v687 = vadd.f32 %v686, %v646
        %v688 = vadd.f32 %v687, %v648
        %v689 = vadd.f32 %v688, %v650
        %v690 = vadd.f32 %v689, %v652
        %v691 = vadd.f32 %v690, %v654
        %v692 = vadd.f32 %v691, %v656
        %v693 = vrot.slane %v692, 4
        %v694 = vadd.f32 %v692, %v693
        %v695 = vrot.slane %v694, 2
        %v696 = vadd.f32 %v694, %v695
        %v697 = vrot.slane %v696, 1
        %v698 = vadd.f32 %v696, %v697
        %v701 = vcombine.low %v677, %v698
        %v703 = vunpack.c.l.s4 1966171168
        %v704 = vunpack.c.0.s8 %v703
        %v705 = vlaneseq
        %v706 = vshrl.u32 %v705, 7
        %v707 = vsub.s32 %v704, %v706
        %v708 = vrot.slane %v701, %v707
        %v710 = vunpack.c.l.s4 1966171168
        %v711 = vunpack.c.0.s8 %v710
        %v712 = vlaneseq
        %v713 = vshrl.u32 %v712, 7
        %v714 = vsub.s32 %v711, %v713
        %v715 = vrot.slane %v708, %v714
        %v717 = vlaneseq
        %vm718 = vcmp.ge.s32.totalorder %v717, 0
        %vm719 = vcmp.lt.s32.totalorder %v717, 256
        %vm720 = vmand %vm718, %vm719
        %721 = vst.msk [vmem:[%s239] ss:$8 sm:$0x3] %vm720, %v715
        %722 = vst.msk [vmem:[%s239] ss:$8 sm:$0x0] %vm720, %v715
        %723 = vrot.lane.b32.xlu0 %v240, 112
        %v724 = vpop.permute.xlu0 %723
        %725 = vrot.lane.b32.xlu0 %v242, 112
        %v726 = vpop.permute.xlu0 %725
        %727 = vrot.lane.b32.xlu0 %v244, 112
        %v728 = vpop.permute.xlu0 %727
        %729 = vrot.lane.b32.xlu0 %v246, 112
        %v730 = vpop.permute.xlu0 %729
        %731 = vrot.lane.b32.xlu0 %v248, 112
        %v732 = vpop.permute.xlu0 %731
        %733 = vrot.lane.b32.xlu0 %v250, 112
        %v734 = vpop.permute.xlu0 %733
        %735 = vrot.lane.b32.xlu0 %v252, 112
        %v736 = vpop.permute.xlu0 %735
        %737 = vrot.lane.b32.xlu0 %v254, 112
        %v738 = vpop.permute.xlu0 %737
        %739 = vrot.lane.b32.xlu0 %v256, 112
        %v740 = vpop.permute.xlu0 %739
        %741 = vrot.lane.b32.xlu0 %v258, 112
        %v742 = vpop.permute.xlu0 %741
        %743 = vrot.lane.b32.xlu0 %v260, 112
        %v744 = vpop.permute.xlu0 %743
        %745 = vrot.lane.b32.xlu0 %v262, 112
        %v746 = vpop.permute.xlu0 %745
        %747 = vrot.lane.b32.xlu0 %v264, 112
        %v748 = vpop.permute.xlu0 %747
        %749 = vrot.lane.b32.xlu0 %v266, 112
        %v750 = vpop.permute.xlu0 %749
        %751 = vrot.lane.b32.xlu0 %v268, 112
        %v752 = vpop.permute.xlu0 %751
        %753 = vrot.lane.b32.xlu0 %v270, 112
        %v754 = vpop.permute.xlu0 %753
        %755 = vrot.lane.b32.xlu0 %v241, 112
        %v756 = vpop.permute.xlu0 %755
        %757 = vrot.lane.b32.xlu0 %v243, 112
        %v758 = vpop.permute.xlu0 %757
        %759 = vrot.lane.b32.xlu0 %v245, 112
        %v760 = vpop.permute.xlu0 %759
        %761 = vrot.lane.b32.xlu0 %v247, 112
        %v762 = vpop.permute.xlu0 %761
        %763 = vrot.lane.b32.xlu0 %v249, 112
        %v764 = vpop.permute.xlu0 %763
        %765 = vrot.lane.b32.xlu0 %v251, 112
        %v766 = vpop.permute.xlu0 %765
        %767 = vrot.lane.b32.xlu0 %v253, 112
        %v768 = vpop.permute.xlu0 %767
        %769 = vrot.lane.b32.xlu0 %v255, 112
        %v770 = vpop.permute.xlu0 %769
        %771 = vrot.lane.b32.xlu0 %v257, 112
        %v772 = vpop.permute.xlu0 %771
        %773 = vrot.lane.b32.xlu0 %v259, 112
        %v774 = vpop.permute.xlu0 %773
        %775 = vrot.lane.b32.xlu0 %v261, 112
        %v776 = vpop.permute.xlu0 %775
        %777 = vrot.lane.b32.xlu0 %v263, 112
        %v778 = vpop.permute.xlu0 %777
        %779 = vrot.lane.b32.xlu0 %v265, 112
        %v780 = vpop.permute.xlu0 %779
        %781 = vrot.lane.b32.xlu0 %v267, 112
        %v782 = vpop.permute.xlu0 %781
        %783 = vrot.lane.b32.xlu0 %v269, 112
        %v784 = vpop.permute.xlu0 %783
        %785 = vrot.lane.b32.xlu0 %v271, 112
        %v786 = vpop.permute.xlu0 %785
        %v787 = vsel %vm378, %v724, %v756
        %v788 = vsel %vm378, %v726, %v758
        %v789 = vsel %vm378, %v728, %v760
        %v790 = vsel %vm378, %v730, %v762
        %v791 = vsel %vm378, %v732, %v764
        %v792 = vsel %vm378, %v734, %v766
        %v793 = vsel %vm378, %v736, %v768
        %v794 = vsel %vm378, %v738, %v770
        %v795 = vsel %vm378, %v740, %v772
        %v796 = vsel %vm378, %v742, %v774
        %v797 = vsel %vm378, %v744, %v776
        %v798 = vsel %vm378, %v746, %v778
        %v799 = vsel %vm378, %v748, %v780
        %v800 = vsel %vm378, %v750, %v782
        %v801 = vsel %vm378, %v752, %v784
        %v802 = vsel %vm378, %v754, %v786
        %v803 = vsel %vm378, %v756, %v724
        %v804 = vsel %vm378, %v758, %v726
        %v805 = vsel %vm378, %v760, %v728
        %v806 = vsel %vm378, %v762, %v730
        %v807 = vsel %vm378, %v764, %v732
        %v808 = vsel %vm378, %v766, %v734
        %v809 = vsel %vm378, %v768, %v736
        %v810 = vsel %vm378, %v770, %v738
        %v811 = vsel %vm378, %v772, %v740
        %v812 = vsel %vm378, %v774, %v742
        %v813 = vsel %vm378, %v776, %v744
        %v814 = vsel %vm378, %v778, %v746
        %v815 = vsel %vm378, %v780, %v748
        %v816 = vsel %vm378, %v782, %v750
        %v817 = vsel %vm378, %v784, %v752
        %v818 = vsel %vm378, %v786, %v754
        %v819 = vsub.f32 %v240, %v787
        %v820 = vsub.f32 %v241, %v803
        %v821 = vsub.f32 %v242, %v788
        %v822 = vsub.f32 %v243, %v804
        %v823 = vsub.f32 %v244, %v789
        %v824 = vsub.f32 %v245, %v805
        %v825 = vsub.f32 %v246, %v790
        %v826 = vsub.f32 %v247, %v806
        %v827 = vsub.f32 %v248, %v791
        %v828 = vsub.f32 %v249, %v807
        %v829 = vsub.f32 %v250, %v792
        %v830 = vsub.f32 %v251, %v808
        %v831 = vsub.f32 %v252, %v793
        %v832 = vsub.f32 %v253, %v809
        %v833 = vsub.f32 %v254, %v794
        %v834 = vsub.f32 %v255, %v810
        %v835 = vsub.f32 %v256, %v795
        %v836 = vsub.f32 %v257, %v811
        %v837 = vsub.f32 %v258, %v796
        %v838 = vsub.f32 %v259, %v812
        %v839 = vsub.f32 %v260, %v797
        %v840 = vsub.f32 %v261, %v813
        %v841 = vsub.f32 %v262, %v798
        %v842 = vsub.f32 %v263, %v814
        %v843 = vsub.f32 %v264, %v799
        %v844 = vsub.f32 %v265, %v815
        %v845 = vsub.f32 %v266, %v800
        %v846 = vsub.f32 %v267, %v816
        %v847 = vsub.f32 %v268, %v801
        %v848 = vsub.f32 %v269, %v817
        %v849 = vsub.f32 %v270, %v802
        %v850 = vsub.f32 %v271, %v818
        %v851 = vand.u32 2147483647, %v819
        %v852 = vand.u32 2147483647, %v820
        %v853 = vand.u32 2147483647, %v821
        %v854 = vand.u32 2147483647, %v822
        %v855 = vand.u32 2147483647, %v823
        %v856 = vand.u32 2147483647, %v824
        %v857 = vand.u32 2147483647, %v825
        %v858 = vand.u32 2147483647, %v826
        %v859 = vand.u32 2147483647, %v827
        %v860 = vand.u32 2147483647, %v828
        %v861 = vand.u32 2147483647, %v829
        %v862 = vand.u32 2147483647, %v830
        %v863 = vand.u32 2147483647, %v831
        %v864 = vand.u32 2147483647, %v832
        %v865 = vand.u32 2147483647, %v833
        %v866 = vand.u32 2147483647, %v834
        %v867 = vand.u32 2147483647, %v835
        %v868 = vand.u32 2147483647, %v836
        %v869 = vand.u32 2147483647, %v837
        %v870 = vand.u32 2147483647, %v838
        %v871 = vand.u32 2147483647, %v839
        %v872 = vand.u32 2147483647, %v840
        %v873 = vand.u32 2147483647, %v841
        %v874 = vand.u32 2147483647, %v842
        %v875 = vand.u32 2147483647, %v843
        %v876 = vand.u32 2147483647, %v844
        %v877 = vand.u32 2147483647, %v845
        %v878 = vand.u32 2147483647, %v846
        %v879 = vand.u32 2147483647, %v847
        %v880 = vand.u32 2147483647, %v848
        %v881 = vand.u32 2147483647, %v849
        %v882 = vand.u32 2147483647, %v850
        %v883 = vlaneseq
        %v884 = vshrl.u32 %v883, 7
        %v885 = vsub.s32 0, %v884
        %v886 = vrot.slane %v455, %v885
        %v887 = vlaneseq
        %v888 = vshrl.u32 %v887, 7
        %v889 = vsub.s32 0, %v888
        %v890 = vrot.slane %v456, %v889
        %v891 = vmul.f32 %v851, %v886
        %v892 = vmul.f32 %v852, %v890
        %v893 = vmul.f32 %v853, %v886
        %v894 = vmul.f32 %v854, %v890
        %v895 = vmul.f32 %v855, %v886
        %v896 = vmul.f32 %v856, %v890
        %v897 = vmul.f32 %v857, %v886
        %v898 = vmul.f32 %v858, %v890
        %v899 = vmul.f32 %v859, %v886
        %v900 = vmul.f32 %v860, %v890
        %v901 = vmul.f32 %v861, %v886
        %v902 = vmul.f32 %v862, %v890
        %v903 = vmul.f32 %v863, %v886
        %v904 = vmul.f32 %v864, %v890
        %v905 = vmul.f32 %v865, %v886
        %v906 = vmul.f32 %v866, %v890
        %v907 = vmul.f32 %v867, %v886
        %v908 = vmul.f32 %v868, %v890
        %v909 = vmul.f32 %v869, %v886
        %v910 = vmul.f32 %v870, %v890
        %v911 = vmul.f32 %v871, %v886
        %v912 = vmul.f32 %v872, %v890
        %v913 = vmul.f32 %v873, %v886
        %v914 = vmul.f32 %v874, %v890
        %v915 = vmul.f32 %v875, %v886
        %v916 = vmul.f32 %v876, %v890
        %v917 = vmul.f32 %v877, %v886
        %v918 = vmul.f32 %v878, %v890
        %v919 = vmul.f32 %v879, %v886
        %v920 = vmul.f32 %v880, %v890
        %v921 = vmul.f32 %v881, %v886
        %v922 = vmul.f32 %v882, %v890
        %v923 = vadd.f32 %v891, %v893
        %v924 = vadd.f32 %v923, %v895
        %v925 = vadd.f32 %v924, %v897
        %v926 = vadd.f32 %v925, %v899
        %v927 = vadd.f32 %v926, %v901
        %v928 = vadd.f32 %v927, %v903
        %v929 = vadd.f32 %v928, %v905
        %v930 = vadd.f32 %v929, %v907
        %v931 = vadd.f32 %v930, %v909
        %v932 = vadd.f32 %v931, %v911
        %v933 = vadd.f32 %v932, %v913
        %v934 = vadd.f32 %v933, %v915
        %v935 = vadd.f32 %v934, %v917
        %v936 = vadd.f32 %v935, %v919
        %v937 = vadd.f32 %v936, %v921
        %v938 = vrot.slane %v937, 4
        %v939 = vadd.f32 %v937, %v938
        %v940 = vrot.slane %v939, 2
        %v941 = vadd.f32 %v939, %v940
        %v942 = vrot.slane %v941, 1
        %v943 = vadd.f32 %v941, %v942
        %v944 = vadd.f32 %v892, %v894
        %v945 = vadd.f32 %v944, %v896
        %v946 = vadd.f32 %v945, %v898
        %v947 = vadd.f32 %v946, %v900
        %v948 = vadd.f32 %v947, %v902
        %v949 = vadd.f32 %v948, %v904
        %v950 = vadd.f32 %v949, %v906
        %v951 = vadd.f32 %v950, %v908
        %v952 = vadd.f32 %v951, %v910
        %v953 = vadd.f32 %v952, %v912
        %v954 = vadd.f32 %v953, %v914
        %v955 = vadd.f32 %v954, %v916
        %v956 = vadd.f32 %v955, %v918
        %v957 = vadd.f32 %v956, %v920
        %v958 = vadd.f32 %v957, %v922
        %v959 = vrot.slane %v958, 4
        %v960 = vadd.f32 %v958, %v959
        %v961 = vrot.slane %v960, 2
        %v962 = vadd.f32 %v960, %v961
        %v963 = vrot.slane %v962, 1
        %v964 = vadd.f32 %v962, %v963
        %v967 = vcombine.low %v943, %v964
        %v969 = vunpack.c.l.s4 1966171168
        %v970 = vunpack.c.0.s8 %v969
        %v971 = vlaneseq
        %v972 = vshrl.u32 %v971, 7
        %v973 = vsub.s32 %v970, %v972
        %v974 = vrot.slane %v967, %v973
        %v976 = vunpack.c.l.s4 1966171168
        %v977 = vunpack.c.0.s8 %v976
        %v978 = vlaneseq
        %v979 = vshrl.u32 %v978, 7
        %v980 = vsub.s32 %v977, %v979
        %v981 = vrot.slane %v974, %v980
        %s983 = scalar_lea.vmem %s239, 1
        %984 = vst.msk [vmem:[%s983] ss:$8 sm:$0x3] %vm720, %v981
        %985 = vst.msk [vmem:[%s983] ss:$8 sm:$0x0] %vm720, %v981
        %986 = vrot.lane.b32.xlu0 %v280, 127
        %v987 = vpop.permute.xlu0 %986
        %988 = vrot.lane.b32.xlu0 %v281, 127
        %v989 = vpop.permute.xlu0 %988
        %v990 = vsel %vm371, %v987, %v989
        %v991 = vsel %vm371, %v989, %v987
        %v994 = vcombine.low %v990, %v991
        %v996 = vunpack.c.l.s4 1983009808
        %v997 = vunpack.c.0.s8 %v996
        %v998 = vlaneseq
        %v999 = vshrl.u32 %v998, 7
        %v1000 = vsub.s32 %v997, %v999
        %v1001 = vrot.slane %v994, %v1000
        %v1003 = vsub.f32 %v272, %v1001
        %v1004 = vand.u32 2147483647, %v1003
        %v1007 = vcombine.low %v620, %v624
        %v1009 = vunpack.c.l.s4 1983009808
        %v1010 = vunpack.c.0.s8 %v1009
        %v1011 = vlaneseq
        %v1012 = vshrl.u32 %v1011, 7
        %v1013 = vsub.s32 %v1010, %v1012
        %v1014 = vrot.slane %v1007, %v1013
        %v1016 = vmul.f32 %v1004, %v1014
        %v1019 = vunpack.c.l.s4 1983009808
        %v1020 = vunpack.c.0.s8 %v1019
        %v1021 = vlaneseq
        %v1022 = vshrl.u32 %v1021, 7
        %v1023 = vsub.s32 %v1020, %v1022
        %v1024 = vrot.slane %v1016, %v1023
        %v1025 = vcombine.high %v1024, %v1024
        %v1028 = vsel %vm354, %v1024, 0.0
        %v1029 = vrot.slane %v1028, 4
        %v1030 = vadd.f32 %v1028, %v1029
        %v1031 = vrot.slane %v1030, 2
        %v1032 = vadd.f32 %v1030, %v1031
        %v1033 = vrot.slane %v1032, 1
        %v1034 = vadd.f32 %v1032, %v1033
        %v1035 = vsel %vm354, %v1025, 0.0
        %v1036 = vrot.slane %v1035, 4
        %v1037 = vadd.f32 %v1035, %v1036
        %v1038 = vrot.slane %v1037, 2
        %v1039 = vadd.f32 %v1037, %v1038
        %v1040 = vrot.slane %v1039, 1
        %v1041 = vadd.f32 %v1039, %v1040
        %v1044 = vcombine.low %v1034, %v1041
        %v1046 = vunpack.c.l.s4 1966171168
        %v1047 = vunpack.c.0.s8 %v1046
        %v1048 = vlaneseq
        %v1049 = vshrl.u32 %v1048, 7
        %v1050 = vsub.s32 %v1047, %v1049
        %v1051 = vrot.slane %v1044, %v1050
        %v1053 = vunpack.c.l.s4 1966171168
        %v1054 = vunpack.c.0.s8 %v1053
        %v1055 = vlaneseq
        %v1056 = vshrl.u32 %v1055, 7
        %v1057 = vsub.s32 %v1054, %v1056
        %v1058 = vrot.slane %v1051, %v1057
        %s1060 = scalar_lea.vmem %s239, 2
        %1061 = vst.msk [vmem:[%s1060] ss:$8 sm:$0x3] %vm720, %v1058
        %1062 = vst.msk [vmem:[%s1060] ss:$8 sm:$0x0] %vm720, %v1058
        %1063 = vrot.lane.b32.xlu0 %v280, 112
        %v1064 = vpop.permute.xlu0 %1063
        %1065 = vrot.lane.b32.xlu0 %v281, 112
        %v1066 = vpop.permute.xlu0 %1065
        %v1067 = vsel %vm378, %v1064, %v1066
        %v1068 = vsel %vm378, %v1066, %v1064
        %v1071 = vcombine.low %v1067, %v1068
        %v1073 = vunpack.c.l.s4 1983009808
        %v1074 = vunpack.c.0.s8 %v1073
        %v1075 = vlaneseq
        %v1076 = vshrl.u32 %v1075, 7
        %v1077 = vsub.s32 %v1074, %v1076
        %v1078 = vrot.slane %v1071, %v1077
        %v1080 = vsub.f32 %v272, %v1078
        %v1081 = vand.u32 2147483647, %v1080
        %v1084 = vcombine.low %v886, %v890
        %v1086 = vunpack.c.l.s4 1983009808
        %v1087 = vunpack.c.0.s8 %v1086
        %v1088 = vlaneseq
        %v1089 = vshrl.u32 %v1088, 7
        %v1090 = vsub.s32 %v1087, %v1089
        %v1091 = vrot.slane %v1084, %v1090
        %v1093 = vmul.f32 %v1081, %v1091
        %v1096 = vunpack.c.l.s4 1983009808
        %v1097 = vunpack.c.0.s8 %v1096
        %v1098 = vlaneseq
        %v1099 = vshrl.u32 %v1098, 7
        %v1100 = vsub.s32 %v1097, %v1099
        %v1101 = vrot.slane %v1093, %v1100
        %v1102 = vcombine.high %v1101, %v1101
        %v1105 = vsel %vm354, %v1101, 0.0
        %v1106 = vrot.slane %v1105, 4
        %v1107 = vadd.f32 %v1105, %v1106
        %v1108 = vrot.slane %v1107, 2
        %v1109 = vadd.f32 %v1107, %v1108
        %v1110 = vrot.slane %v1109, 1
        %v1111 = vadd.f32 %v1109, %v1110
        %v1112 = vsel %vm354, %v1102, 0.0
        %v1113 = vrot.slane %v1112, 4
        %v1114 = vadd.f32 %v1112, %v1113
        %v1115 = vrot.slane %v1114, 2
        %v1116 = vadd.f32 %v1114, %v1115
        %v1117 = vrot.slane %v1116, 1
        %v1118 = vadd.f32 %v1116, %v1117
        %v1121 = vcombine.low %v1111, %v1118
        %v1123 = vunpack.c.l.s4 1966171168
        %v1124 = vunpack.c.0.s8 %v1123
        %v1125 = vlaneseq
        %v1126 = vshrl.u32 %v1125, 7
        %v1127 = vsub.s32 %v1124, %v1126
        %v1128 = vrot.slane %v1121, %v1127
        %v1130 = vunpack.c.l.s4 1966171168
        %v1131 = vunpack.c.0.s8 %v1130
        %v1132 = vlaneseq
        %v1133 = vshrl.u32 %v1132, 7
        %v1134 = vsub.s32 %v1131, %v1133
        %v1135 = vrot.slane %v1128, %v1134
        %s1137 = scalar_lea.vmem %s239, 3
        %1138 = vst.msk [vmem:[%s1137] ss:$8 sm:$0x3] %vm720, %v1135
        %1139 = vst.msk [vmem:[%s1137] ss:$8 sm:$0x0] %vm720, %v1135
        %v1140 = vadd.f32 %v272, 0.0
        %v1143 = vunpack.c.l.s4 1983009808
        %v1144 = vunpack.c.0.s8 %v1143
        %v1145 = vlaneseq
        %v1146 = vshrl.u32 %v1145, 7
        %v1147 = vsub.s32 %v1144, %v1146
        %v1148 = vrot.slane %v1140, %v1147
        %v1149 = vcombine.low %v1148, %v1148
        %1152 = vst [vmem:[%s239] sm:$0x30] %v1149
        %1153 = vst [vmem:[%s239 + $0x8] sm:$0x30] %v1148
        %s1154 = sand.u32 %s84, 1
        %s1155 = scalar_lea.sflag [#allocation4], %s1154
        %s1156 = sand.u32 %s84, 1
        %s1157 = smul.addr %s1156, 2
        %s1158 = scalar_lea.vmem [#allocation7], %s1157
        %p1159 = scmp.lt.s32.totalorder %s24, 1
        %s1160 = scalar_select %p1159, %s24, 1
        %s1161 = smul.addr %s1160, 2
        %s1162 = smul.addr %s1161, 8
        %s1163 = scalar_lea.vmem %s3, %s1162
        // Predicated region
        $region37: #{tpu_custom_call.1} parent=27 // pred_check
          %p1164 = pneg %p94
        $region38: #{tpu_custom_call.1} parent=27 // pred_check_branch
          %1166 = sbr.rel (%p1164) target = $region40
        $region39: #{tpu_custom_call.1} parent=27 // pred_region
          %s1168 = ssub.s32 32, 32
          %1169 = vsyncadd %s1155, %s1168
          %s1170 = smul.addr %s24, 32
          %s1171 = scalar_lea.hbm %s2, %s1170
          %s1173 = sshll.u32 %s1158, 4
          %s1174 = int_to_ptr.vmem [resolvable:$true] %s1173
          %1176 = dma.vmem_to_hbm [thread:$0]  %s1174, 32, %s1171, %s1155
        $region40: #{tpu_custom_call.1} parent=27 // pred_fallthru
          _
        // Predicated region
        $region41: #{tpu_custom_call.1} parent=27 // pred_check
          %p1177 = pneg %p120
        $region42: #{tpu_custom_call.1} parent=27 // pred_check_branch
          %1179 = sbr.rel (%p1177) target = $region44
        $region43: #{tpu_custom_call.1} parent=27 // pred_region
          _
        $region44: #{tpu_custom_call.1} parent=27 // pred_fallthru
          _
      $region28: #{tpu_custom_call.1} parent=5 // pred_fallthru
        _
      %p1180 = scmp.le.s32.totalorder 2, %s19
      // Predicated region
      $region45: #{tpu_custom_call.1} parent=5 // pred_check
        %p1181 = pneg %p1180
      $region46: #{tpu_custom_call.1} parent=5 // pred_check_branch
        %1183 = sbr.rel (%p1181) target = $region48
      $region47: #{tpu_custom_call.1} parent=5 // pred_region
        %s1184 = ssub.s32 %s19, 2
        // Predicated region
        $region49: #{tpu_custom_call.1} parent=47 // pred_check
          %p1185 = pneg %p100
        $region50: #{tpu_custom_call.1} parent=47 // pred_check_branch
          %1187 = sbr.rel (%p1185) target = $region52
        $region51: #{tpu_custom_call.1} parent=47 // pred_region
          %s1188 = sand.u32 %s85, 1
          %s1189 = scalar_lea.sflag [#allocation4], %s1188
          %s1190 = sand.u32 %s85, 1
          %s1191 = smul.addr %s1190, 2
          %s1192 = scalar_lea.vmem [#allocation7], %s1191
          %1193 = dma.done %s1189, 32
        $region52: #{tpu_custom_call.1} parent=47 // pred_fallthru
          _
        // Predicated region
        $region53: #{tpu_custom_call.1} parent=47 // pred_check
          %p1194 = pneg %p126
        $region54: #{tpu_custom_call.1} parent=47 // pred_check_branch
          %1196 = sbr.rel (%p1194) target = $region56
        $region55: #{tpu_custom_call.1} parent=47 // pred_region
          %p1197 = scmp.lt.s32.totalorder %s25, 1
          %s1198 = scalar_select %p1197, %s25, 1
          %s1199 = smul.addr %s1198, 2
          %s1200 = smul.addr %s1199, 8
          %s1201 = scalar_lea.vmem %s3, %s1200
        $region56: #{tpu_custom_call.1} parent=47 // pred_fallthru
          _
      $region48: #{tpu_custom_call.1} parent=5 // pred_fallthru
        _
    $region6: #{tpu_custom_call.1} parent=1 // loop_footer
      %s23 = sadd.s32 1, %s19
    $region7: #{tpu_custom_call.1} parent=1 // loop_footer_branch
      %18 = sbr.rel target = $region3
    $region8: #{tpu_custom_call.1} parent=1 // loop_exit
      _
    %1202 = vsyncpa [#allocation3], 1
    %s1203 = scalar_lea.sflag [#allocation3], 1
    %1204 = vsyncpa %s1203, 1
    %1205 = vsyncpa [#allocation6], 1
    %s1206 = scalar_lea.sflag [#allocation6], 1
    %1207 = vsyncpa %s1206, 1
    %1208 = vsyncpa [#allocation4], 1
    %s1209 = scalar_lea.sflag [#allocation4], 1
    %1210 = vsyncpa %s1209, 1

</llo_original>
